<compile_context>
chip_gen: v5e
topology: v5e:2x2
jax: 0.10.0
libtpu: 0.0.40
codegen_flags: <defaults>
</compile_context>

<pallas_src>
import functools

import jax
import jax.numpy as jnp
from jax.experimental import pallas as pl
from jax.experimental.pallas import tpu as pltpu


# ---------------------------------------------------------------------------
# Phase 1: global activity = mean(|x|), accumulated across batch tiles.
# ---------------------------------------------------------------------------
def _activity_kernel(x_ref, act_ref, *, inv_count):
    i = pl.program_id(0)

    @pl.when(i == 0)
    def _init():
        act_ref[...] = jnp.zeros_like(act_ref)

    # Reduce this batch tile in f32 (keepdims -> (1,1), matches the resident
    # accumulator block; no scalar extraction needed).
    part = jnp.sum(jnp.abs(x_ref[...].astype(jnp.float32)), keepdims=True)
    act_ref[...] += part

    @pl.when(i == pl.num_programs(0) - 1)
    def _finalize():
        # mean = sum * (1/N); 1/N is a compile-time constant.
        act_ref[...] *= inv_count


def _activity(x, tile_b):
    batch, feat = x.shape
    grid = (batch // tile_b,)
    act = pl.pallas_call(
        functools.partial(_activity_kernel, inv_count=1.0 / float(batch * feat)),
        out_shape=jax.ShapeDtypeStruct((1, 1), jnp.float32),
        grid=grid,
        in_specs=[pl.BlockSpec((tile_b, feat), lambda i: (i, 0))],
        out_specs=pl.BlockSpec((1, 1), lambda i: (0, 0)),
        compiler_params=pltpu.CompilerParams(
            dimension_semantics=("arbitrary",)),
    )(x)
    return act[0, 0]


# ---------------------------------------------------------------------------
# Phase 2: y = x @ W.T + b   (only executed when activity > threshold).
# ---------------------------------------------------------------------------
def _linear_kernel(x_ref, w_ref, b_ref, y_ref):
    # w stays in PyTorch (out_features, in_features) layout; contract x dim 1
    # with w dim 1 -- the MXU handles the transposed contraction natively, so
    # no transpose is ever materialized in HBM.  Operands keep their native
    # dtype; accumulation is f32 via preferred_element_type.
    y = jax.lax.dot_general(
        x_ref[...], w_ref[...],
        dimension_numbers=(((1,), (1,)), ((), ())),
        preferred_element_type=jnp.float32,
    )
    y = y + b_ref[...].astype(jnp.float32)
    y_ref[...] = y.astype(y_ref.dtype)


def _linear(x, w, b2, tile_b):
    batch, f_in = x.shape
    f_out = w.shape[0]
    grid = (batch // tile_b,)

    # Rough VMEM budget: double-buffered x/y tiles + resident W + bias,
    # with 2x headroom; floor 8 MiB, cap 48 MiB (safe on v7x's 64 MiB/TC).
    x_b = jnp.dtype(x.dtype).itemsize
    w_b = jnp.dtype(w.dtype).itemsize
    vmem_bytes = (2 * tile_b * f_in * x_b
                  + 2 * tile_b * f_out * x_b
                  + 2 * f_out * f_in * w_b
                  + 2 * f_out * jnp.dtype(b2.dtype).itemsize)
    vmem_limit = int(min(max(2 * vmem_bytes, 8 << 20), 48 << 20))

    return pl.pallas_call(
        _linear_kernel,
        out_shape=jax.ShapeDtypeStruct((batch, f_out), x.dtype),
        grid=grid,
        in_specs=[
            pl.BlockSpec((tile_b, f_in), lambda i: (i, 0)),   # x batch tile
            pl.BlockSpec((f_out, f_in), lambda i: (0, 0)),    # W resident
            pl.BlockSpec((1, f_out), lambda i: (0, 0)),       # bias resident
        ],
        out_specs=pl.BlockSpec((tile_b, f_out), lambda i: (i, 0)),
        compiler_params=pltpu.CompilerParams(
            dimension_semantics=("parallel",),
            vmem_limit_bytes=vmem_limit),
    )(x, w, b2)


# ---------------------------------------------------------------------------
# Wrapper with the activity-routed decision.
# ---------------------------------------------------------------------------
def _pick_batch_tile(batch):
    # Largest sublane-aligned tile that divides the batch (512-row tiles are
    # the measured sweet spot on v6e; v5e/v7x are fine with these sizes too).
    for cand in (512, 256, 128, 64, 32, 16, 8):
        if batch % cand == 0:
            return cand
    return batch


def activity_routed_block(x, w, b, threshold=0.1):
    """x: (B, F_in); w: (F_out, F_in) [PyTorch layout]; b: (F_out,)."""
    batch, f_in = x.shape
    f_out, f_in_w = w.shape
    assert f_in_w == f_in
    # The pass-through branch only type-checks when in == out features
    # (same constraint the PyTorch module has in practice).
    assert f_in == f_out, "pass-through branch requires in_features == out_features"

    tile_b = _pick_batch_tile(batch)
    b2 = b.reshape(1, f_out)  # broadcastable bias row (free reshape, no copy)

    # Phase 1: global activity over *all* batch tiles.
    act = _activity(x, tile_b)

    # Phase 2: routing decision hoisted to the wrapper.  The cold branch
    # skips the weight DMA and the MXU matmul entirely.
    # TODO(synk): user-supplied `activity_fn` callables are not translated;
    # only the default mean(|x|) is implemented.
    y = jax.lax.cond(
        act > threshold,
        lambda ops: _linear(ops[0], ops[1], ops[2], tile_b),
        lambda ops: ops[0],
        (x, w, b2),
    )
    return y, act


def _reference(x, w, b, threshold=0.1):
    act = jnp.mean(jnp.abs(x))
    lin = x @ w.T + b
    out = jnp.where(act > threshold, lin, x)
    return out, act


if __name__ == "__main__":
    # Lane-dense shapes: F multiple of 128, B a multiple of the batch tile
    # (B=1024 with 512-row tiles -> 2 pipelined grid steps).
    B, F = 1024, 128
    key = jax.random.PRNGKey(0)
    kx, kw, kb = jax.random.split(key, 3)

    # nn.Linear-style init: U(-1/sqrt(in), 1/sqrt(in)); W in (out, in) layout.
    bound = 1.0 / (F ** 0.5)
    x = jax.random.normal(kx, (B, F), dtype=jnp.float32)
    w = jax.random.uniform(kw, (F, F), minval=-bound, maxval=bound,
                           dtype=jnp.float32)
    b = jax.random.uniform(kb, (F,), minval=-bound, maxval=bound,
                           dtype=jnp.float32)

    # Hot branch (activity >> threshold): tiled MXU linear kernel runs.
    y, act = activity_routed_block(x, w, b, threshold=0.1)
    y = jax.block_until_ready(y)
    act = jax.block_until_ready(act)
    y_ref, act_ref = _reference(x, w, b, threshold=0.1)
    assert jnp.allclose(act, act_ref, rtol=1e-5, atol=1e-6), "activity mismatch"
    assert jnp.allclose(y, y_ref, rtol=1e-3, atol=1e-3), "output mismatch"

    # Cold branch (activity < threshold): pass-through, skips weights/matmul.
    y2, act2 = activity_routed_block(x * 1e-3, w, b, threshold=0.1)
    y2 = jax.block_until_ready(y2)
    y2_ref, act2_ref = _reference(x * 1e-3, w, b, threshold=0.1)
    assert jnp.allclose(act2, act2_ref, rtol=1e-5, atol=1e-6), "activity mismatch (cold)"
    assert jnp.allclose(y2, y2_ref, rtol=1e-5, atol=1e-6), "output mismatch (cold)"

    print("KERNEL_OK")
</pallas_src>

<mosaic_0001>
module attributes {stable_mosaic.version = 11 : i64} {
  func.func @_activity_kernel(%arg0: i32, %arg1: memref<512x128xf32, #tpu.memory_space<vmem>>, %arg2: memref<1x1xf32, #tpu.memory_space<vmem>>) attributes {dimension_semantics = [#tpu.dimension_semantics<arbitrary>], iteration_bounds = array<i64: 2>, scalar_prefetch = 0 : i64, scratch_operands = 0 : i64, tpu.core_type = #tpu.core_type<tc>, window_params = [{transform_indices = @transform_0, window_bounds = array<i64: 512, 128>}, {pipeline_mode = #tpu.pipeline_mode<synchronous>, transform_indices = @transform_1, window_bounds = array<i64: 1, 1>}]} {
    %c0_i32 = arith.constant 0 : i32
    %0 = arith.cmpi eq, %arg0, %c0_i32 : i32
    %1 = arith.extui %0 : i1 to i32
    %c0_i32_0 = arith.constant 0 : i32
    %2 = arith.cmpi ne, %1, %c0_i32_0 : i32
    scf.if %2 {
      %cst_7 = arith.constant 0.000000e+00 : f32
      %16 = vector.broadcast %cst_7 : f32 to vector<1x1xf32>
      %c0_8 = arith.constant 0 : index
      %c0_9 = arith.constant 0 : index
      %17 = vector.load %arg2[%c0_8, %c0_9] : memref<1x1xf32, #tpu.memory_space<vmem>>, vector<1x1xf32>
      tpu.vector_store %arg2[%c0_8, %c0_9], %16 {strides = array<i32>} : memref<1x1xf32, #tpu.memory_space<vmem>>, vector<1x1xf32>,
    } else {
    }
    %c0 = arith.constant 0 : index
    %c0_1 = arith.constant 0 : index
    %3 = vector.load %arg1[%c0, %c0_1] : memref<512x128xf32, #tpu.memory_space<vmem>>, vector<512x128xf32>
    %4 = math.absf %3 : vector<512x128xf32>
    %5 = vector.shape_cast %4 : vector<512x128xf32> to vector<1x512x128xf32>
    %cst = arith.constant dense<0.000000e+00> : vector<1xf32>
    %6 = vector.multi_reduction <add>, %5, %cst [1, 2] : vector<1x512x128xf32> to vector<1xf32>
    %7 = vector.shape_cast %6 : vector<1xf32> to vector<1x1x1xf32>
    %8 = vector.extract %7[0, 0, 0] : f32 from vector<1x1x1xf32>
    %9 = vector.broadcast %8 : f32 to vector<1x1xf32>
    %c0_2 = arith.constant 0 : index
    %c0_3 = arith.constant 0 : index
    %10 = vector.load %arg2[%c0_2, %c0_3] : memref<1x1xf32, #tpu.memory_space<vmem>>, vector<1x1xf32>
    %11 = arith.addf %10, %9 : vector<1x1xf32>
    %c0_4 = arith.constant 0 : index
    %c0_5 = arith.constant 0 : index
    %12 = vector.load %arg2[%c0_4, %c0_5] : memref<1x1xf32, #tpu.memory_space<vmem>>, vector<1x1xf32>
    tpu.vector_store %arg2[%c0_4, %c0_5], %11 {strides = array<i32>} : memref<1x1xf32, #tpu.memory_space<vmem>>, vector<1x1xf32>,
    %c1_i32 = arith.constant 1 : i32
    %13 = arith.cmpi eq, %arg0, %c1_i32 : i32
    %14 = arith.extui %13 : i1 to i32
    %c0_i32_6 = arith.constant 0 : i32
    %15 = arith.cmpi ne, %14, %c0_i32_6 : i32
    scf.if %15 {
      %c0_7 = arith.constant 0 : index
      %c0_8 = arith.constant 0 : index
      %16 = vector.load %arg2[%c0_7, %c0_8] : memref<1x1xf32, #tpu.memory_space<vmem>>, vector<1x1xf32>
      %cst_9 = arith.constant 7.62939453E-6 : f32
      %17 = vector.broadcast %cst_9 : f32 to vector<1x1xf32>
      %18 = arith.mulf %16, %17 : vector<1x1xf32>
      %c0_10 = arith.constant 0 : index
      %c0_11 = arith.constant 0 : index
      %19 = vector.load %arg2[%c0_10, %c0_11] : memref<1x1xf32, #tpu.memory_space<vmem>>, vector<1x1xf32>
      tpu.vector_store %arg2[%c0_10, %c0_11], %18 {strides = array<i32>} : memref<1x1xf32, #tpu.memory_space<vmem>>, vector<1x1xf32>,
    } else {
    }
    return
  }
  func.func @transform_0(%arg0: i32) -> (i32, i32) {
    %c0_i32 = arith.constant 0 : i32
    %c0_i32_0 = arith.constant 0 : i32
    return %arg0, %c0_i32 : i32, i32
  }
  func.func @transform_1(%arg0: i32) -> (i32, i32) {
    %c0_i32 = arith.constant 0 : i32
    %c0_i32_0 = arith.constant 0 : i32
    %c0_i32_1 = arith.constant 0 : i32
    return %c0_i32, %c0_i32_0 : i32, i32
  }
}

</mosaic_0001>

<llo_original>
// kernel: tpu_custom_call.1
$region0: #{tpu_custom_call.1}
  #allocation0 [shape = 'u32[]', space=smem, size = 0x4, offset = 0x4, fixed_abs, tag = 'smem constant byte address 0x4 - core index']
  #allocation1 [shape = 'u32[72,128]{1,0:T(1,128)}', space=vmem, size = 0x9000, scoped, tag = 'internal scratch']
  %s0 = inlined_call_operand.hbm [shape: f32[1024,128], index: 0, kind: input, shape index: {}]
  %s1 = inlined_call_operand.hbm [shape: f32[1,1], index: 1, kind: output, shape index: {}]
  %s2 = sld [smem:[#allocation0]]
  $region49: #{tpu_custom_call.1} parent=0
    _
  %s4 = ssub.s32 1, %s2
  %s5 = scalar_select 0, %s4, %s2
  $region1: #{tpu_custom_call.1} parent=0
    #allocation2 [shape = 'u8[524288]{0}', space=vmem, size = 0x80000, scoped, tag = 'input window, operand 0']
    #allocation3 [shape = 's32[2]{0}', space=sflag, size = 0x8, scoped, tag = 'scoped memory for tpu_custom_call.1']
    #allocation4 [shape = 's32[2]{0}', space=sflag, size = 0x8, scoped, tag = 'scoped memory for tpu_custom_call.1']
    #allocation5 [shape = 'u8[512]{0}', space=vmem, size = 0x400, scoped, tag = 'output window, operand 0, single buffered']
    %6 = vsyncpa [#allocation3], 0
    %s7 = scalar_lea.sflag [#allocation3], 1
    %8 = vsyncpa %s7, 0
    %9 = vsyncpa [#allocation4], 0
    loop: start=0, step=1, limit=4
    $region2: #{tpu_custom_call.1} parent=1 // loop_pre_header
      _
    $region3: #{tpu_custom_call.1} parent=1 // loop_header
      %s11 = sphi 0, %s15
      %p12 = scmp.ge.s32.totalorder %s11, 4
      %s21 = sphi 0, %s23
      %s24 = sphi 0, %s21
      %s25 = sphi 0, %s24
      %s41 = sphi 0, %s25
      %s45 = sphi 0, %s45
      %s47 = sphi 0, %s45
      %s48 = sphi 0, %s47
      %s62 = sphi 0, %s48
    $region4: #{tpu_custom_call.1} parent=1 // loop_header_branch
      %14 = sbr.rel (%p12) target = $region8
    $region5: #{tpu_custom_call.1} parent=1 // loop_body
      %s16 = ssub.s32 %s11, 1
      %s17 = ssub.s32 %s11, 2
      %s18 = sadd.s32 %s11, 1
      %s19 = ssub.s32 %s11, %s18
      %p20 = scmp.eq.s32.totalorder %s19, 0
      %s22 = sadd.s32 %s21, 1
      %s23 = scalar_select %p20, %s21, %s22
      %p26 = pneg %p20
      %p27 = scmp.eq.s32.totalorder %s11, 1
      %p28 = por %p26, %p27
      %p29 = scmp.ne.s32.totalorder %s21, %s24
      %p30 = scmp.eq.s32.totalorder %s11, 0
      %p31 = por %p29, %p30
      %p32 = scmp.ne.s32.totalorder %s21, %s24
      %p33 = scmp.eq.s32.totalorder %s16, 1
      %p34 = por %p32, %p33
      %p35 = scmp.ne.s32.totalorder %s24, %s25
      %p36 = scmp.eq.s32.totalorder %s16, 0
      %p37 = por %p35, %p36
      %p38 = scmp.ne.s32.totalorder %s24, %s25
      %p39 = scmp.eq.s32.totalorder %s17, 1
      %p40 = por %p38, %p39
      %p42 = scmp.ne.s32.totalorder %s25, %s41
      %p43 = scmp.eq.s32.totalorder %s17, 0
      %p44 = por %p42, %p43
      %s46 = sadd.s32 %s45, 1
      %p49 = scmp.eq.s32.totalorder %s11, 1
      %p50 = scmp.ne.s32.totalorder %s45, %s47
      %p51 = scmp.eq.s32.totalorder %s11, 0
      %p52 = por %p50, %p51
      %p53 = scmp.ne.s32.totalorder %s45, %s47
      %p54 = scmp.eq.s32.totalorder %s16, 1
      %p55 = por %p53, %p54
      %p56 = scmp.ne.s32.totalorder %s47, %s48
      %p57 = scmp.eq.s32.totalorder %s16, 0
      %p58 = por %p56, %p57
      %p59 = scmp.ne.s32.totalorder %s47, %s48
      %p60 = scmp.eq.s32.totalorder %s17, 1
      %p61 = por %p59, %p60
      %p63 = scmp.ne.s32.totalorder %s48, %s62
      %p64 = scmp.eq.s32.totalorder %s17, 0
      %p65 = por %p63, %p64
      %p66 = scmp.le.s32.totalorder 1, %s11
      %p67 = scmp.lt.s32.totalorder %s11, 3
      %p68 = pnand %p66, %p67
      %p69 = pneg %p68
      // Predicated region
      $region9: #{tpu_custom_call.1} parent=5 // pred_check
        _
      $region10: #{tpu_custom_call.1} parent=5 // pred_check_branch
        %71 = sbr.rel (%p68) target = $region12
      $region11: #{tpu_custom_call.1} parent=5 // pred_region
        %s72 = ssub.s32 %s11, 1
      $region12: #{tpu_custom_call.1} parent=5 // pred_fallthru
        _
      %p73 = scmp.lt.s32.totalorder %s11, 2
      // Predicated region
      $region13: #{tpu_custom_call.1} parent=5 // pred_check
        %p74 = pneg %p73
      $region14: #{tpu_custom_call.1} parent=5 // pred_check_branch
        %76 = sbr.rel (%p74) target = $region16
      $region15: #{tpu_custom_call.1} parent=5 // pred_region
        // Predicated region
        $region17: #{tpu_custom_call.1} parent=15 // pred_check
          %p77 = pneg %p31
        $region18: #{tpu_custom_call.1} parent=15 // pred_check_branch
          %79 = sbr.rel (%p77) target = $region20
        $region19: #{tpu_custom_call.1} parent=15 // pred_region
          %s80 = sand.u32 %s21, 1
          %s81 = scalar_lea.sflag [#allocation3], %s80
          %s82 = sand.u32 %s21, 1
          %s83 = smul.addr %s82, 512
          %s84 = scalar_lea.vmem [#allocation2], %s83
          %s85 = smul.u32 64, %s11
          %87 = vsyncadd %s81, 0
          %s88 = smul.addr %s85, 8
          %s89 = scalar_lea.hbm %s0, %s88
          %s90 = sshll.u32 %s89, 4
          %s91 = int_to_ptr.hbm [resolvable:$true] %s90
          %s92 = sshll.u32 %s84, 4
          %s93 = int_to_ptr.vmem [resolvable:$true] %s92
          %98 = dma.hbm_to_vmem [thread:$0]  %s91, 8192, %s93, %s81, 128, 128, 8
        $region20: #{tpu_custom_call.1} parent=15 // pred_fallthru
          _
      $region16: #{tpu_custom_call.1} parent=5 // pred_fallthru
        _
      %p99 = scmp.le.s32.totalorder 1, %s11
      %p100 = scmp.lt.s32.totalorder %s11, 3
      %p101 = pnand %p99, %p100
      %p102 = pneg %p101
      // Predicated region
      $region21: #{tpu_custom_call.1} parent=5 // pred_check
        _
      $region22: #{tpu_custom_call.1} parent=5 // pred_check_branch
        %104 = sbr.rel (%p101) target = $region24
      $region23: #{tpu_custom_call.1} parent=5 // pred_region
        %s105 = ssub.s32 %s11, 1
        %s106 = sand.u32 %s24, 1
        %s107 = scalar_lea.sflag [#allocation3], %s106
        %s108 = sand.u32 %s24, 1
        %s109 = smul.addr %s108, 512
        %s110 = scalar_lea.vmem [#allocation2], %s109
        // Predicated region
        $region25: #{tpu_custom_call.1} parent=23 // pred_check
          %p111 = pneg %p37
        $region26: #{tpu_custom_call.1} parent=23 // pred_check_branch
          %113 = sbr.rel (%p111) target = $region28
        $region27: #{tpu_custom_call.1} parent=23 // pred_region
          %115 = dma.done %s107, 8192
        $region28: #{tpu_custom_call.1} parent=23 // pred_fallthru
          _
        %s116 = sand.u32 %s24, 1
        %s117 = scalar_lea.sflag [#allocation3], %s116
        %s118 = sand.u32 %s24, 1
        %s119 = smul.addr %s118, 512
        %s120 = scalar_lea.vmem [#allocation2], %s119
        %p121 = pneg %p37
        %p122 = pneg %p34
        %p123 = pneg %p58
        %p124 = pneg %p55
        %s125 = smul.u32 64, %s16
        %p126 = scmp.eq.s32.totalorder %s16, 0
        // Predicated region
        $region29: #{tpu_custom_call.1} parent=23 // pred_check
          %p127 = pneg %p126
        $region30: #{tpu_custom_call.1} parent=23 // pred_check_branch
          %129 = sbr.rel (%p127) target = $region32
        $region31: #{tpu_custom_call.1} parent=23 // pred_region
          %vm130 = vcmask 0
          %131 = vst.msk [vmem:[#allocation5] sm:$0x1] %vm130, 0.0
        $region32: #{tpu_custom_call.1} parent=23 // pred_fallthru
          _
        %v132 = vld [vmem:[%s110] sm:$0xff]
        %v133 = vld [vmem:[%s110 + $0x8] sm:$0xff]
        %v134 = vld [vmem:[%s110 + $0x10] sm:$0xff]
        %v135 = vld [vmem:[%s110 + $0x18] sm:$0xff]
        %v136 = vld [vmem:[%s110 + $0x20] sm:$0xff]
        %v137 = vld [vmem:[%s110 + $0x28] sm:$0xff]
        %v138 = vld [vmem:[%s110 + $0x30] sm:$0xff]
        %v139 = vld [vmem:[%s110 + $0x38] sm:$0xff]
        %v140 = vld [vmem:[%s110 + $0x40] sm:$0xff]
        %v141 = vld [vmem:[%s110 + $0x48] sm:$0xff]
        %v142 = vld [vmem:[%s110 + $0x50] sm:$0xff]
        %v143 = vld [vmem:[%s110 + $0x58] sm:$0xff]
        %v144 = vld [vmem:[%s110 + $0x60] sm:$0xff]
        %v145 = vld [vmem:[%s110 + $0x68] sm:$0xff]
        %v146 = vld [vmem:[%s110 + $0x70] sm:$0xff]
        %v147 = vld [vmem:[%s110 + $0x78] sm:$0xff]
        %v148 = vld [vmem:[%s110 + $0x80] sm:$0xff]
        %v149 = vld [vmem:[%s110 + $0x88] sm:$0xff]
        %v150 = vld [vmem:[%s110 + $0x90] sm:$0xff]
        %v151 = vld [vmem:[%s110 + $0x98] sm:$0xff]
        %v152 = vld [vmem:[%s110 + $0xa0] sm:$0xff]
        %v153 = vld [vmem:[%s110 + $0xa8] sm:$0xff]
        %v154 = vld [vmem:[%s110 + $0xb0] sm:$0xff]
        %v155 = vld [vmem:[%s110 + $0xb8] sm:$0xff]
        %v156 = vld [vmem:[%s110 + $0xc0] sm:$0xff]
        %v157 = vld [vmem:[%s110 + $0xc8] sm:$0xff]
        %v158 = vld [vmem:[%s110 + $0xd0] sm:$0xff]
        %v159 = vld [vmem:[%s110 + $0xd8] sm:$0xff]
        %v160 = vld [vmem:[%s110 + $0xe0] sm:$0xff]
        %v161 = vld [vmem:[%s110 + $0xe8] sm:$0xff]
        %v162 = vld [vmem:[%s110 + $0xf0] sm:$0xff]
        %v163 = vld [vmem:[%s110 + $0xf8] sm:$0xff]
        %v164 = vld [vmem:[%s110 + $0x100] sm:$0xff]
        %v165 = vld [vmem:[%s110 + $0x108] sm:$0xff]
        %v166 = vld [vmem:[%s110 + $0x110] sm:$0xff]
        %v167 = vld [vmem:[%s110 + $0x118] sm:$0xff]
        %v168 = vld [vmem:[%s110 + $0x120] sm:$0xff]
        %v169 = vld [vmem:[%s110 + $0x128] sm:$0xff]
        %v170 = vld [vmem:[%s110 + $0x130] sm:$0xff]
        %v171 = vld [vmem:[%s110 + $0x138] sm:$0xff]
        %v172 = vld [vmem:[%s110 + $0x140] sm:$0xff]
        %v173 = vld [vmem:[%s110 + $0x148] sm:$0xff]
        %v174 = vld [vmem:[%s110 + $0x150] sm:$0xff]
        %v175 = vld [vmem:[%s110 + $0x158] sm:$0xff]
        %v176 = vld [vmem:[%s110 + $0x160] sm:$0xff]
        %v177 = vld [vmem:[%s110 + $0x168] sm:$0xff]
        %v178 = vld [vmem:[%s110 + $0x170] sm:$0xff]
        %v179 = vld [vmem:[%s110 + $0x178] sm:$0xff]
        %v180 = vld [vmem:[%s110 + $0x180] sm:$0xff]
        %v181 = vld [vmem:[%s110 + $0x188] sm:$0xff]
        %v182 = vld [vmem:[%s110 + $0x190] sm:$0xff]
        %v183 = vld [vmem:[%s110 + $0x198] sm:$0xff]
        %v184 = vld [vmem:[%s110 + $0x1a0] sm:$0xff]
        %v185 = vld [vmem:[%s110 + $0x1a8] sm:$0xff]
        %v186 = vld [vmem:[%s110 + $0x1b0] sm:$0xff]
        %v187 = vld [vmem:[%s110 + $0x1b8] sm:$0xff]
        %v188 = vld [vmem:[%s110 + $0x1c0] sm:$0xff]
        %v189 = vld [vmem:[%s110 + $0x1c8] sm:$0xff]
        %v190 = vld [vmem:[%s110 + $0x1d0] sm:$0xff]
        %v191 = vld [vmem:[%s110 + $0x1d8] sm:$0xff]
        %v192 = vld [vmem:[%s110 + $0x1e0] sm:$0xff]
        %v193 = vld [vmem:[%s110 + $0x1e8] sm:$0xff]
        %v194 = vld [vmem:[%s110 + $0x1f0] sm:$0xff]
        %v195 = vld [vmem:[%s110 + $0x1f8] sm:$0xff]
        %v196 = vand.u32 2147483647, %v132
        %v197 = vand.u32 2147483647, %v133
        %v198 = vand.u32 2147483647, %v134
        %v199 = vand.u32 2147483647, %v135
        %v200 = vand.u32 2147483647, %v136
        %v201 = vand.u32 2147483647, %v137
        %v202 = vand.u32 2147483647, %v138
        %v203 = vand.u32 2147483647, %v139
        %v204 = vand.u32 2147483647, %v140
        %v205 = vand.u32 2147483647, %v141
        %v206 = vand.u32 2147483647, %v142
        %v207 = vand.u32 2147483647, %v143
        %v208 = vand.u32 2147483647, %v144
        %v209 = vand.u32 2147483647, %v145
        %v210 = vand.u32 2147483647, %v146
        %v211 = vand.u32 2147483647, %v147
        %v212 = vand.u32 2147483647, %v148
        %v213 = vand.u32 2147483647, %v149
        %v214 = vand.u32 2147483647, %v150
        %v215 = vand.u32 2147483647, %v151
        %v216 = vand.u32 2147483647, %v152
        %v217 = vand.u32 2147483647, %v153
        %v218 = vand.u32 2147483647, %v154
        %v219 = vand.u32 2147483647, %v155
        %v220 = vand.u32 2147483647, %v156
        %v221 = vand.u32 2147483647, %v157
        %v222 = vand.u32 2147483647, %v158
        %v223 = vand.u32 2147483647, %v159
        %v224 = vand.u32 2147483647, %v160
        %v225 = vand.u32 2147483647, %v161
        %v226 = vand.u32 2147483647, %v162
        %v227 = vand.u32 2147483647, %v163
        %v228 = vand.u32 2147483647, %v164
        %v229 = vand.u32 2147483647, %v165
        %v230 = vand.u32 2147483647, %v166
        %v231 = vand.u32 2147483647, %v167
        %v232 = vand.u32 2147483647, %v168
        %v233 = vand.u32 2147483647, %v169
        %v234 = vand.u32 2147483647, %v170
        %v235 = vand.u32 2147483647, %v171
        %v236 = vand.u32 2147483647, %v172
        %v237 = vand.u32 2147483647, %v173
        %v238 = vand.u32 2147483647, %v174
        %v239 = vand.u32 2147483647, %v175
        %v240 = vand.u32 2147483647, %v176
        %v241 = vand.u32 2147483647, %v177
        %v242 = vand.u32 2147483647, %v178
        %v243 = vand.u32 2147483647, %v179
        %v244 = vand.u32 2147483647, %v180
        %v245 = vand.u32 2147483647, %v181
        %v246 = vand.u32 2147483647, %v182
        %v247 = vand.u32 2147483647, %v183
        %v248 = vand.u32 2147483647, %v184
        %v249 = vand.u32 2147483647, %v185
        %v250 = vand.u32 2147483647, %v186
        %v251 = vand.u32 2147483647, %v187
        %v252 = vand.u32 2147483647, %v188
        %v253 = vand.u32 2147483647, %v189
        %v254 = vand.u32 2147483647, %v190
        %v255 = vand.u32 2147483647, %v191
        %v256 = vand.u32 2147483647, %v192
        %v257 = vand.u32 2147483647, %v193
        %v258 = vand.u32 2147483647, %v194
        %v259 = vand.u32 2147483647, %v195
        %v260 = vadd.f32 %v196, %v197
        %v261 = vadd.f32 %v260, %v198
        %v262 = vadd.f32 %v261, %v199
        %v263 = vadd.f32 %v262, %v200
        %v264 = vadd.f32 %v263, %v201
        %v265 = vadd.f32 %v264, %v202
        %v266 = vadd.f32 %v265, %v203
        %v267 = vadd.f32 %v266, %v204
        %v268 = vadd.f32 %v267, %v205
        %v269 = vadd.f32 %v268, %v206
        %v270 = vadd.f32 %v269, %v207
        %v271 = vadd.f32 %v270, %v208
        %v272 = vadd.f32 %v271, %v209
        %v273 = vadd.f32 %v272, %v210
        %v274 = vadd.f32 %v273, %v211
        %v275 = vadd.f32 %v274, %v212
        %v276 = vadd.f32 %v275, %v213
        %v277 = vadd.f32 %v276, %v214
        %v278 = vadd.f32 %v277, %v215
        %v279 = vadd.f32 %v278, %v216
        %v280 = vadd.f32 %v279, %v217
        %v281 = vadd.f32 %v280, %v218
        %v282 = vadd.f32 %v281, %v219
        %v283 = vadd.f32 %v282, %v220
        %v284 = vadd.f32 %v283, %v221
        %v285 = vadd.f32 %v284, %v222
        %v286 = vadd.f32 %v285, %v223
        %v287 = vadd.f32 %v286, %v224
        %v288 = vadd.f32 %v287, %v225
        %v289 = vadd.f32 %v288, %v226
        %v290 = vadd.f32 %v289, %v227
        %v291 = vadd.f32 %v290, %v228
        %v292 = vadd.f32 %v291, %v229
        %v293 = vadd.f32 %v292, %v230
        %v294 = vadd.f32 %v293, %v231
        %v295 = vadd.f32 %v294, %v232
        %v296 = vadd.f32 %v295, %v233
        %v297 = vadd.f32 %v296, %v234
        %v298 = vadd.f32 %v297, %v235
        %v299 = vadd.f32 %v298, %v236
        %v300 = vadd.f32 %v299, %v237
        %v301 = vadd.f32 %v300, %v238
        %v302 = vadd.f32 %v301, %v239
        %v303 = vadd.f32 %v302, %v240
        %v304 = vadd.f32 %v303, %v241
        %v305 = vadd.f32 %v304, %v242
        %v306 = vadd.f32 %v305, %v243
        %v307 = vadd.f32 %v306, %v244
        %v308 = vadd.f32 %v307, %v245
        %v309 = vadd.f32 %v308, %v246
        %v310 = vadd.f32 %v309, %v247
        %v311 = vadd.f32 %v310, %v248
        %v312 = vadd.f32 %v311, %v249
        %v313 = vadd.f32 %v312, %v250
        %v314 = vadd.f32 %v313, %v251
        %v315 = vadd.f32 %v314, %v252
        %v316 = vadd.f32 %v315, %v253
        %v317 = vadd.f32 %v316, %v254
        %v318 = vadd.f32 %v317, %v255
        %v319 = vadd.f32 %v318, %v256
        %v320 = vadd.f32 %v319, %v257
        %v321 = vadd.f32 %v320, %v258
        %v322 = vadd.f32 %v321, %v259
        %323 = vadd.xlane.f32.xlu0 %v322
        %v324 = vpop.xlane.xlu0 %323
        %v325 = vrot.slane %v324, 4
        %v326 = vadd.f32 %v324, %v325
        %v327 = vrot.slane %v326, 2
        %v328 = vadd.f32 %v326, %v327
        %v329 = vrot.slane %v328, 1
        %v330 = vadd.f32 %v328, %v329
        %s331 = vtos %v330
        %v332 = vstv %s331
        %v333 = vld [vmem:[#allocation5] sm:$0x1]
        %v334 = vadd.f32 %v333, %v332
        %vm335 = vcmask 0
        %336 = vst.msk [vmem:[#allocation5] sm:$0x1] %vm335, %v334
        %p337 = scmp.eq.s32.totalorder %s16, 1
        // Predicated region
        $region33: #{tpu_custom_call.1} parent=23 // pred_check
          %p338 = pneg %p337
        $region34: #{tpu_custom_call.1} parent=23 // pred_check_branch
          %340 = sbr.rel (%p338) target = $region36
        $region35: #{tpu_custom_call.1} parent=23 // pred_region
          %v341 = vld [vmem:[#allocation5] sm:$0x1]
          %v342 = vmul.f32 %v341, 7.6293945e-06
          %343 = vst.msk [vmem:[#allocation5] sm:$0x1] %vm335, %v342
        $region36: #{tpu_custom_call.1} parent=23 // pred_fallthru
          _
        // Predicated region
        $region37: #{tpu_custom_call.1} parent=23 // pred_check
          %p344 = pneg %p55
        $region38: #{tpu_custom_call.1} parent=23 // pred_check_branch
          %346 = sbr.rel (%p344) target = $region40
        $region39: #{tpu_custom_call.1} parent=23 // pred_region
          %348 = vsyncadd [#allocation4], 0
          %s350 = sshll.u32 [#allocation5], 4
          %s351 = int_to_ptr.vmem [resolvable:$true] %s350
          %s352 = sshll.u32 %s1, 4
          %s353 = int_to_ptr.hbm [resolvable:$true] %s352
          %355 = dma.vmem_to_hbm [thread:$0]  %s351, 16, %s353, [#allocation4]
        $region40: #{tpu_custom_call.1} parent=23 // pred_fallthru
          _
        // Predicated region
        $region41: #{tpu_custom_call.1} parent=23 // pred_check
          %p356 = pneg %p55
        $region42: #{tpu_custom_call.1} parent=23 // pred_check_branch
          %358 = sbr.rel (%p356) target = $region44
        $region43: #{tpu_custom_call.1} parent=23 // pred_region
          %360 = dma.done [#allocation4], 16
        $region44: #{tpu_custom_call.1} parent=23 // pred_fallthru
          _
      $region24: #{tpu_custom_call.1} parent=5 // pred_fallthru
        _
      %p361 = scmp.le.s32.totalorder 2, %s11
      // Predicated region
      $region45: #{tpu_custom_call.1} parent=5 // pred_check
        %p362 = pneg %p361
      $region46: #{tpu_custom_call.1} parent=5 // pred_check_branch
        %364 = sbr.rel (%p362) target = $region48
      $region47: #{tpu_custom_call.1} parent=5 // pred_region
        %s365 = ssub.s32 %s11, 2
      $region48: #{tpu_custom_call.1} parent=5 // pred_fallthru
        _
    $region6: #{tpu_custom_call.1} parent=1 // loop_footer
      %s15 = sadd.s32 1, %s11
    $region7: #{tpu_custom_call.1} parent=1 // loop_footer_branch
      %10 = sbr.rel target = $region3
    $region8: #{tpu_custom_call.1} parent=1 // loop_exit
      _
    %366 = vsyncpa [#allocation3], 1
    %s367 = scalar_lea.sflag [#allocation3], 1
    %368 = vsyncpa %s367, 1
    %369 = vsyncpa [#allocation4], 1
    %s370 = scalar_lea.sflag [#allocation4], 1
    %371 = vsyncpa %s370, 1

</llo_original>
